<compile_context>
chip_gen: v7x
topology: tpu7x:2x2x1
jax: 0.10.0
libtpu: 0.0.40
codegen_flags: <defaults>
</compile_context>

<pallas_src>
import jax
import jax.numpy as jnp
from jax.experimental import pallas as pl
from jax.experimental.pallas import tpu as pltpu


def _make_kernel(Nb, L, L_pad, Lp, C_in, C_out, C_out2, K, pooling, L_out):
    def kernel(x_ref, w_ref, b_ref, o_ref):
        # x_ref: (Nb, C_in, L)       input batch block, PyTorch NCL layout
        # w_ref: (K, C_in, 2*C_out)  packed weight: [:, :, :C_out] main conv taps,
        #                            tap K-1 also carries the residual 1x1 conv
        # b_ref: (1, 2*C_out)        packed [b_main | b_res]
        # o_ref: (Nb, C_out, L_out)  output block, NCL layout
        x = x_ref[...].astype(jnp.float32)          # upcast in VMEM (bf16-DMA friendly)
        x = jnp.transpose(x, (0, 2, 1))             # (Nb, L, C_in): time->sublanes, C->lanes

        if L_pad != L:
            # MaxPool1d(ceil_mode=True) ragged tail handled on the VMEM value:
            # no wrapper-side -inf jnp.pad HBM pass.
            x = jnp.concatenate(
                [x, jnp.full((Nb, L_pad - L, C_in), -jnp.inf, jnp.float32)], axis=1)

        if pooling > 1:
            # Non-overlapping window max: sublane regroup (lane dim untouched) + VPU max.
            x = x.reshape(Nb, Lp, pooling, C_in).max(axis=2)     # (Nb, Lp, C_in)

        # Conv1d + residual 1x1 as K accumulating batched MXU contractions over
        # sublane-shifted views (im2col without any concat / relayout copies).
        w = w_ref[...]                              # (K, C_in, 2*C_out)
        y = None
        for k in range(K):
            wk = jnp.broadcast_to(w[k], (Nb, C_in, C_out2))
            t = jnp.einsum('btc,bco->bto', x[:, k:k + L_out, :], wk,
                           preferred_element_type=jnp.float32)
            y = t if y is None else y + t           # (Nb, L_out, 2*C_out)
        y = y + b_ref[...][None, :, :]              # add [b_main | b_res]

        main = jnp.maximum(y[..., :C_out], 0.0)     # ReLU(conv + b_main)
        res = y[..., C_out:]                        # residual 1x1 conv + b_res
        out = main + res                            # (Nb, L_out, C_out)

        # Single full-block store, back in NCL layout (lane axis = time, which is the
        # large / lane-dense axis for production L). No wrapper output transpose.
        o_ref[...] = jnp.transpose(out, (0, 2, 1)).astype(o_ref.dtype)

    return kernel


def conv_ar_block(x_ncl, w_main_t, b_main, w_res, b_res, *,
                  kernel_size, pooling=1, stride=1, batch_block=8, target_grid_steps=4):
    """Fused ConvolutionalArBlock forward (residual=True with 1x1 conv, batch_norm=False).

    x_ncl    : (N, C_in, L)        PyTorch NCL layout
    w_main_t : (K, C_in, C_out)    main Conv1d weight, tap-major / transposed
    b_main   : (1, C_out)
    w_res    : (C_in, C_out)       residual 1x1 Conv1d weight (transposed)
    b_res    : (1, C_out)
    returns  : (N, C_out, L_out)   NCL layout, matching the PyTorch module
    """
    assert stride == 1  # TODO(synk): strided Conv1d output sampling not implemented
    N, C_in, L = x_ncl.shape
    K, _, C_out = w_main_t.shape
    assert K == kernel_size

    Lp = -(-L // pooling)          # pooled length, MaxPool1d ceil_mode=True
    L_pad = Lp * pooling
    L_out = Lp - K + 1             # Conv1d, stride 1
    assert L_out > 0, "pooled length must be >= kernel_size"
    C_out2 = 2 * C_out

    # Pack main taps + residual 1x1 (on tap K-1; with stride==1 the residual pooled input
    # trimmed to the last L_out frames is exactly the tap-(K-1) shifted view) into one
    # weight, and both biases into one operand.
    w_res_taps = jnp.zeros((K, C_in, C_out), jnp.float32).at[K - 1].set(
        w_res.astype(jnp.float32))
    w_comb = jnp.concatenate([w_main_t.astype(jnp.float32), w_res_taps], axis=2)
    b_comb = jnp.concatenate([b_main, b_res], axis=1).astype(jnp.float32)

    # Grid sizing: keep several pipeline steps (DMA/compute overlap, megacore / v7x 2-TC
    # sharding) while still feeding multiple batch rows per step to amortise the
    # ~0.35us/step overhead.  Batch padding only happens in the ragged case.
    Nb = min(batch_block, max(1, N // target_grid_steps))
    n_blocks = -(-N // Nb)
    N_pad = n_blocks * Nb
    x_in = x_ncl
    if N_pad != N:
        # TODO(synk): clamp the index_map instead of padding to avoid this HBM pass.
        x_in = jnp.pad(x_in, ((0, N_pad - N), (0, 0), (0, 0)))

    kernel = _make_kernel(Nb, L, L_pad, Lp, C_in, C_out, C_out2, K, pooling, L_out)

    # Explicit VMEM budget (v7x physical VMEM is only 64 MiB): double-buffered in/out
    # blocks + grid-invariant operands + slack for the in-kernel f32 intermediates.
    itemsize = jnp.dtype(x_in.dtype).itemsize
    block_bytes = (2 * Nb * C_in * L * itemsize            # double-buffered input block
                   + 2 * Nb * C_out * L_out * 4            # double-buffered output block
                   + (K * C_in * C_out2 + C_out2) * 8      # weights + biases (2 buffers)
                   + 6 * Nb * L_pad * max(C_in, C_out2) * 4)  # transposed/pooled/acc temps
    vmem_limit = int(min(32 * 2 ** 20, max(16 * 2 ** 20, 2 * block_bytes)))

    out_ncl = pl.pallas_call(
        kernel,
        out_shape=jax.ShapeDtypeStruct((N_pad, C_out, L_out), jnp.float32),
        grid_spec=pltpu.PrefetchScalarGridSpec(
            num_scalar_prefetch=0,
            grid=(n_blocks,),
            in_specs=[
                pl.BlockSpec((Nb, C_in, L), lambda n: (n, 0, 0)),
                # Grid-invariant operands below.
                # TODO(synk): pipeline_mode=pl.Buffered(1) to drop their double buffer
                # once verified on the target jax/Mosaic version.
                pl.BlockSpec((K, C_in, C_out2), lambda n: (0, 0, 0)),
                pl.BlockSpec((1, C_out2), lambda n: (0, 0)),
            ],
            out_specs=pl.BlockSpec((Nb, C_out, L_out), lambda n: (n, 0, 0)),
        ),
        compiler_params=pltpu.CompilerParams(
            dimension_semantics=("parallel",),
            vmem_limit_bytes=vmem_limit,
        ),
        # TODO(synk): for long-L production configs add a halo'd time-tile grid axis
        # ((K-1)*pooling sample overlap via pl.Element offsets or manual DMA) so v7x's
        # 64 MiB VMEM and both of its TensorCores stay fed.
    )(x_in, w_comb, b_comb)

    return out_ncl[:N]   # already NCL — no wrapper output transpose / extra HBM pass


def _reference(x_ncl, w_main_t, b_main, w_res, b_res, *, kernel_size, pooling, stride):
    """Pure-JAX reference with module semantics (ceil_mode=True max-pools, stride=1)."""
    N, C, L = x_ncl.shape
    K, _, C_out = w_main_t.shape
    Lp = -(-L // pooling)
    L_pad = Lp * pooling
    xpad = jnp.pad(x_ncl.astype(jnp.float32), ((0, 0), (0, 0), (0, L_pad - L)),
                   constant_values=-jnp.inf)
    xp = xpad.reshape(N, C, Lp, pooling).max(-1)      # main pool == residual pool (stride==1)
    L_out = Lp - K + 1
    out = jnp.zeros((N, L_out, C_out), jnp.float32)
    for k in range(K):
        out = out + jnp.einsum('ncl,co->nlo', xp[:, :, k:k + L_out], w_main_t[k])
    main = jnp.maximum(out + b_main, 0.0)
    res = jnp.einsum('ncl,co->nlo', xp, w_res) + b_res
    main = main + res[:, Lp - L_out:, :]
    return jnp.transpose(main, (0, 2, 1))


if __name__ == "__main__":
    # Module config: ConvolutionalArBlock(in_channels=4, out_channels=8, kernel_size=3,
    #                                     pooling=2, stride=1, bias=True, residual=True,
    #                                     batch_norm=False)
    # TODO(synk): batch_norm=True path (training-mode BatchNorm1d batch stats) not implemented.
    # TODO(synk): ActivationWriter is a host-side side effect; no Pallas equivalent.
    def _run_case(N, C_in, C_out, K, L, pooling):
        key = jax.random.PRNGKey(0)
        k_x, k_wm, k_bm, k_wr, k_br = jax.random.split(key, 5)
        x = jax.random.normal(k_x, (N, C_in, L), dtype=jnp.float32)

        s_main = 1.0 / jnp.sqrt(jnp.float32(C_in * K))
        s_res = 1.0 / jnp.sqrt(jnp.float32(C_in))
        w_main_t = jax.random.uniform(k_wm, (K, C_in, C_out), jnp.float32, -s_main, s_main)
        b_main = jax.random.uniform(k_bm, (1, C_out), jnp.float32, -s_main, s_main)
        w_res = jax.random.uniform(k_wr, (C_in, C_out), jnp.float32, -s_res, s_res)
        b_res = jax.random.uniform(k_br, (1, C_out), jnp.float32, -s_res, s_res)

        out = conv_ar_block(x, w_main_t, b_main, w_res, b_res,
                            kernel_size=K, pooling=pooling, stride=1)
        out = jax.block_until_ready(out)
        ref = _reference(x, w_main_t, b_main, w_res, b_res,
                         kernel_size=K, pooling=pooling, stride=1)
        Lp = -(-L // pooling)
        assert out.shape == (N, C_out, Lp - K + 1)
        assert jnp.allclose(out, ref, atol=1e-5, rtol=1e-5)

    _run_case(N=2, C_in=4, C_out=8, K=3, L=16, pooling=2)   # main config
    _run_case(N=2, C_in=4, C_out=8, K=3, L=15, pooling=2)   # ceil_mode ragged tail window
    _run_case(N=2, C_in=4, C_out=8, K=3, L=16, pooling=1)   # no-pooling module
    _run_case(N=8, C_in=4, C_out=8, K=3, L=16, pooling=2)   # multi-row blocks (Nb=2, grid=4)
    print("KERNEL_OK")
</pallas_src>

<mosaic_0001>
module attributes {stable_mosaic.version = 11 : i64} {
  func.func @kernel(%arg0: i32, %arg1: memref<1x4x16xf32, #tpu.memory_space<vmem>>, %arg2: memref<3x4x16xf32, #tpu.memory_space<vmem>>, %arg3: memref<1x16xf32, #tpu.memory_space<vmem>>, %arg4: memref<1x8x6xf32, #tpu.memory_space<vmem>>) attributes {dimension_semantics = [#tpu.dimension_semantics<parallel>], iteration_bounds = array<i64: 2>, scalar_prefetch = 0 : i64, scratch_operands = 0 : i64, tpu.core_type = #tpu.core_type<tc>, window_params = [{transform_indices = @transform_0, window_bounds = array<i64: 1, 4, 16>}, {pipeline_mode = #tpu.pipeline_mode<synchronous>, transform_indices = @transform_1, window_bounds = array<i64: 3, 4, 16>}, {pipeline_mode = #tpu.pipeline_mode<synchronous>, transform_indices = @transform_2, window_bounds = array<i64: 1, 16>}, {transform_indices = @transform_3, window_bounds = array<i64: 1, 8, 6>}]} {
    %c0 = arith.constant 0 : index
    %c0_0 = arith.constant 0 : index
    %c0_1 = arith.constant 0 : index
    %0 = vector.load %arg1[%c0, %c0_0, %c0_1] : memref<1x4x16xf32, #tpu.memory_space<vmem>>, vector<1x4x16xf32>
    %1 = tpu.transpose %0, [0, 2, 1] : vector<1x4x16xf32> -> vector<1x16x4xf32>
    %2 = vector.shape_cast %1 : vector<1x16x4xf32> to vector<1x8x2x4xf32>
    %cst = arith.constant dense<0xFF800000> : vector<1x8x4xf32>
    %3 = vector.multi_reduction <maximumf>, %2, %cst [2] : vector<1x8x2x4xf32> to vector<1x8x4xf32>
    %c0_2 = arith.constant 0 : index
    %c0_3 = arith.constant 0 : index
    %c0_4 = arith.constant 0 : index
    %4 = vector.load %arg2[%c0_2, %c0_3, %c0_4] : memref<3x4x16xf32, #tpu.memory_space<vmem>>, vector<3x4x16xf32>
    %5 = vector.extract_strided_slice %4 {offsets = [0, 0, 0], sizes = [1, 4, 16], strides = [1, 1, 1]} : vector<3x4x16xf32> to vector<1x4x16xf32>
    %6 = vector.shape_cast %5 : vector<1x4x16xf32> to vector<4x16xf32>
    %7 = vector.shape_cast %6 : vector<4x16xf32> to vector<1x4x16xf32>
    %8 = vector.extract_strided_slice %3 {offsets = [0, 0, 0], sizes = [1, 6, 4], strides = [1, 1, 1]} : vector<1x8x4xf32> to vector<1x6x4xf32>
    "tpu.trace_start"() <{level = 10 : i32, message = "btc,bco->bto"}> : () -> ()
    %cst_5 = arith.constant dense<0.000000e+00> : vector<1x6x16xf32>
    %9 = tpu.matmul %8, %7, %cst_5 {dimension_numbers = #tpu.dot_dimension_numbers<[2], [1], [1], [2], [0, 0, 0, 1, 1, 2], [0], [0]>} : vector<1x6x4xf32>, vector<1x4x16xf32>, vector<1x6x16xf32> -> vector<1x6x16xf32>
    "tpu.trace_stop"() : () -> ()
    %10 = vector.extract_strided_slice %4 {offsets = [1, 0, 0], sizes = [1, 4, 16], strides = [1, 1, 1]} : vector<3x4x16xf32> to vector<1x4x16xf32>
    %11 = vector.shape_cast %10 : vector<1x4x16xf32> to vector<4x16xf32>
    %12 = vector.shape_cast %11 : vector<4x16xf32> to vector<1x4x16xf32>
    %13 = vector.extract_strided_slice %3 {offsets = [0, 1, 0], sizes = [1, 6, 4], strides = [1, 1, 1]} : vector<1x8x4xf32> to vector<1x6x4xf32>
    "tpu.trace_start"() <{level = 10 : i32, message = "btc,bco->bto"}> : () -> ()
    %cst_6 = arith.constant dense<0.000000e+00> : vector<1x6x16xf32>
    %14 = tpu.matmul %13, %12, %cst_6 {dimension_numbers = #tpu.dot_dimension_numbers<[2], [1], [1], [2], [0, 0, 0, 1, 1, 2], [0], [0]>} : vector<1x6x4xf32>, vector<1x4x16xf32>, vector<1x6x16xf32> -> vector<1x6x16xf32>
    "tpu.trace_stop"() : () -> ()
    %15 = arith.addf %9, %14 : vector<1x6x16xf32>
    %16 = vector.extract_strided_slice %4 {offsets = [2, 0, 0], sizes = [1, 4, 16], strides = [1, 1, 1]} : vector<3x4x16xf32> to vector<1x4x16xf32>
    %17 = vector.shape_cast %16 : vector<1x4x16xf32> to vector<4x16xf32>
    %18 = vector.shape_cast %17 : vector<4x16xf32> to vector<1x4x16xf32>
    %19 = vector.extract_strided_slice %3 {offsets = [0, 2, 0], sizes = [1, 6, 4], strides = [1, 1, 1]} : vector<1x8x4xf32> to vector<1x6x4xf32>
    "tpu.trace_start"() <{level = 10 : i32, message = "btc,bco->bto"}> : () -> ()
    %cst_7 = arith.constant dense<0.000000e+00> : vector<1x6x16xf32>
    %20 = tpu.matmul %19, %18, %cst_7 {dimension_numbers = #tpu.dot_dimension_numbers<[2], [1], [1], [2], [0, 0, 0, 1, 1, 2], [0], [0]>} : vector<1x6x4xf32>, vector<1x4x16xf32>, vector<1x6x16xf32> -> vector<1x6x16xf32>
    "tpu.trace_stop"() : () -> ()
    %21 = arith.addf %15, %20 : vector<1x6x16xf32>
    %c0_8 = arith.constant 0 : index
    %c0_9 = arith.constant 0 : index
    %22 = vector.load %arg3[%c0_8, %c0_9] : memref<1x16xf32, #tpu.memory_space<vmem>>, vector<1x16xf32>
    %23 = vector.shape_cast %22 : vector<1x16xf32> to vector<1x1x16xf32>
    %24 = vector.broadcast %23 : vector<1x1x16xf32> to vector<1x6x16xf32>
    %25 = arith.addf %21, %24 : vector<1x6x16xf32>
    %26 = vector.extract_strided_slice %25 {offsets = [0, 0, 0], sizes = [1, 6, 8], strides = [1, 1, 1]} : vector<1x6x16xf32> to vector<1x6x8xf32>
    %cst_10 = arith.constant 0.000000e+00 : f32
    %27 = vector.broadcast %cst_10 : f32 to vector<1x6x8xf32>
    %28 = arith.maximumf %26, %27 : vector<1x6x8xf32>
    %29 = vector.extract_strided_slice %25 {offsets = [0, 0, 8], sizes = [1, 6, 8], strides = [1, 1, 1]} : vector<1x6x16xf32> to vector<1x6x8xf32>
    %30 = arith.addf %28, %29 : vector<1x6x8xf32>
    %31 = tpu.transpose %30, [0, 2, 1] : vector<1x6x8xf32> -> vector<1x8x6xf32>
    %c0_11 = arith.constant 0 : index
    %c0_12 = arith.constant 0 : index
    %c0_13 = arith.constant 0 : index
    %32 = vector.load %arg4[%c0_11, %c0_12, %c0_13] : memref<1x8x6xf32, #tpu.memory_space<vmem>>, vector<1x8x6xf32>
    tpu.vector_store %arg4[%c0_11, %c0_12, %c0_13], %31 {strides = array<i32>} : memref<1x8x6xf32, #tpu.memory_space<vmem>>, vector<1x8x6xf32>,
    return
  }
  func.func @transform_0(%arg0: i32) -> (i32, i32, i32) {
    %c0_i32 = arith.constant 0 : i32
    %c0_i32_0 = arith.constant 0 : i32
    %c0_i32_1 = arith.constant 0 : i32
    return %arg0, %c0_i32, %c0_i32_0 : i32, i32, i32
  }
  func.func @transform_1(%arg0: i32) -> (i32, i32, i32) {
    %c0_i32 = arith.constant 0 : i32
    %c0_i32_0 = arith.constant 0 : i32
    %c0_i32_1 = arith.constant 0 : i32
    %c0_i32_2 = arith.constant 0 : i32
    return %c0_i32, %c0_i32_0, %c0_i32_1 : i32, i32, i32
  }
  func.func @transform_2(%arg0: i32) -> (i32, i32) {
    %c0_i32 = arith.constant 0 : i32
    %c0_i32_0 = arith.constant 0 : i32
    %c0_i32_1 = arith.constant 0 : i32
    return %c0_i32, %c0_i32_0 : i32, i32
  }
  func.func @transform_3(%arg0: i32) -> (i32, i32, i32) {
    %c0_i32 = arith.constant 0 : i32
    %c0_i32_0 = arith.constant 0 : i32
    %c0_i32_1 = arith.constant 0 : i32
    return %arg0, %c0_i32, %c0_i32_0 : i32, i32, i32
  }
}

</mosaic_0001>

<llo_original>
// kernel: tpu_custom_call.1
$region0: #{tpu_custom_call.1}
  #allocation0 [shape = 'u32[]', space=smem, size = 0x4, offset = 0x4, fixed_abs, tag = 'smem constant byte address 0x4 - core index']
  #allocation1 [shape = 'u32[144,128]{1,0:T(1,128)}', space=vmem, size = 0x12000, scoped, tag = 'internal scratch']
  %s0 = inlined_call_operand.hbm [shape: f32[2,4,16], index: 0, kind: input, shape index: {}]
  %s1 = inlined_call_operand.hbm [shape: f32[3,4,16], index: 1, kind: input, shape index: {}]
  %s2 = inlined_call_operand.vmem [shape: f32[1,16], index: 2, kind: input, shape index: {}]
  %s3 = inlined_call_operand.vmem [shape: f32[2,8,6], index: 3, kind: output, shape index: {}]
  %s4 = sld [smem:[#allocation0]]
  $region53: #{tpu_custom_call.1} parent=0
    _
  %s6 = ssub.s32 1, %s4
  %s7 = scalar_select 0, %s6, %s4
  $region1: #{tpu_custom_call.1} parent=0
    #allocation2 [shape = 'u8[4096]{0}', space=vmem, size = 0x1000, scoped, tag = 'input window, operand 0']
    #allocation3 [shape = 's32[2]{0}', space=sflag, size = 0x8, scoped, tag = 'scoped memory for tpu_custom_call.1']
    #allocation4 [shape = 'u8[6144]{0}', space=vmem, size = 0x1800, scoped, tag = 'input window, operand 1, single buffered']
    #allocation5 [shape = 's32[1]{0}', space=sflag, size = 0x4, scoped, tag = 'scoped memory for tpu_custom_call.1']
    %8 = vsyncpa [#allocation3], 0
    %s9 = scalar_lea.sflag [#allocation3], 1
    %10 = vsyncpa %s9, 0
    %11 = vsyncpa [#allocation5], 0
    loop: start=0, step=1, limit=4
    $region2: #{tpu_custom_call.1} parent=1 // loop_pre_header
      _
    $region3: #{tpu_custom_call.1} parent=1 // loop_header
      %s13 = sphi 0, %s17
      %p14 = scmp.ge.s32.totalorder %s13, 4
      %s23 = sphi 0, %s25
      %s26 = sphi 0, %s23
      %s27 = sphi 0, %s26
      %s43 = sphi 0, %s27
      %s47 = sphi 0, %s47
      %s49 = sphi 0, %s47
      %s50 = sphi 0, %s49
      %s64 = sphi 0, %s50
      %s68 = sphi 0, %s68
      %s70 = sphi 0, %s68
      %s71 = sphi 0, %s70
      %s85 = sphi 0, %s71
      %s91 = sphi 0, %s93
      %s94 = sphi 0, %s91
      %s95 = sphi 0, %s94
      %s111 = sphi 0, %s95
    $region4: #{tpu_custom_call.1} parent=1 // loop_header_branch
      %16 = sbr.rel (%p14) target = $region8
    $region5: #{tpu_custom_call.1} parent=1 // loop_body
      %s18 = ssub.s32 %s13, 1
      %s19 = ssub.s32 %s13, 2
      %s20 = sadd.s32 %s13, 1
      %s21 = ssub.s32 %s13, %s20
      %p22 = scmp.eq.s32.totalorder %s21, 0
      %s24 = sadd.s32 %s23, 1
      %s25 = scalar_select %p22, %s23, %s24
      %p28 = pneg %p22
      %p29 = scmp.eq.s32.totalorder %s13, 1
      %p30 = por %p28, %p29
      %p31 = scmp.ne.s32.totalorder %s23, %s26
      %p32 = scmp.eq.s32.totalorder %s13, 0
      %p33 = por %p31, %p32
      %p34 = scmp.ne.s32.totalorder %s23, %s26
      %p35 = scmp.eq.s32.totalorder %s18, 1
      %p36 = por %p34, %p35
      %p37 = scmp.ne.s32.totalorder %s26, %s27
      %p38 = scmp.eq.s32.totalorder %s18, 0
      %p39 = por %p37, %p38
      %p40 = scmp.ne.s32.totalorder %s26, %s27
      %p41 = scmp.eq.s32.totalorder %s19, 1
      %p42 = por %p40, %p41
      %p44 = scmp.ne.s32.totalorder %s27, %s43
      %p45 = scmp.eq.s32.totalorder %s19, 0
      %p46 = por %p44, %p45
      %s48 = sadd.s32 %s47, 1
      %p51 = scmp.eq.s32.totalorder %s13, 1
      %p52 = scmp.ne.s32.totalorder %s47, %s49
      %p53 = scmp.eq.s32.totalorder %s13, 0
      %p54 = por %p52, %p53
      %p55 = scmp.ne.s32.totalorder %s47, %s49
      %p56 = scmp.eq.s32.totalorder %s18, 1
      %p57 = por %p55, %p56
      %p58 = scmp.ne.s32.totalorder %s49, %s50
      %p59 = scmp.eq.s32.totalorder %s18, 0
      %p60 = por %p58, %p59
      %p61 = scmp.ne.s32.totalorder %s49, %s50
      %p62 = scmp.eq.s32.totalorder %s19, 1
      %p63 = por %p61, %p62
      %p65 = scmp.ne.s32.totalorder %s50, %s64
      %p66 = scmp.eq.s32.totalorder %s19, 0
      %p67 = por %p65, %p66
      %s69 = sadd.s32 %s68, 1
      %p72 = scmp.eq.s32.totalorder %s13, 1
      %p73 = scmp.ne.s32.totalorder %s68, %s70
      %p74 = scmp.eq.s32.totalorder %s13, 0
      %p75 = por %p73, %p74
      %p76 = scmp.ne.s32.totalorder %s68, %s70
      %p77 = scmp.eq.s32.totalorder %s18, 1
      %p78 = por %p76, %p77
      %p79 = scmp.ne.s32.totalorder %s70, %s71
      %p80 = scmp.eq.s32.totalorder %s18, 0
      %p81 = por %p79, %p80
      %p82 = scmp.ne.s32.totalorder %s70, %s71
      %p83 = scmp.eq.s32.totalorder %s19, 1
      %p84 = por %p82, %p83
      %p86 = scmp.ne.s32.totalorder %s71, %s85
      %p87 = scmp.eq.s32.totalorder %s19, 0
      %p88 = por %p86, %p87
      %s89 = ssub.s32 %s13, %s20
      %p90 = scmp.eq.s32.totalorder %s89, 0
      %s92 = sadd.s32 %s91, 1
      %s93 = scalar_select %p90, %s91, %s92
      %p96 = pneg %p90
      %p97 = scmp.eq.s32.totalorder %s13, 1
      %p98 = por %p96, %p97
      %p99 = scmp.ne.s32.totalorder %s91, %s94
      %p100 = scmp.eq.s32.totalorder %s13, 0
      %p101 = por %p99, %p100
      %p102 = scmp.ne.s32.totalorder %s91, %s94
      %p103 = scmp.eq.s32.totalorder %s18, 1
      %p104 = por %p102, %p103
      %p105 = scmp.ne.s32.totalorder %s94, %s95
      %p106 = scmp.eq.s32.totalorder %s18, 0
      %p107 = por %p105, %p106
      %p108 = scmp.ne.s32.totalorder %s94, %s95
      %p109 = scmp.eq.s32.totalorder %s19, 1
      %p110 = por %p108, %p109
      %p112 = scmp.ne.s32.totalorder %s95, %s111
      %p113 = scmp.eq.s32.totalorder %s19, 0
      %p114 = por %p112, %p113
      %p115 = scmp.le.s32.totalorder 1, %s13
      %p116 = scmp.lt.s32.totalorder %s13, 3
      %p117 = pnand %p115, %p116
      %p118 = pneg %p117
      // Predicated region
      $region9: #{tpu_custom_call.1} parent=5 // pred_check
        _
      $region10: #{tpu_custom_call.1} parent=5 // pred_check_branch
        %120 = sbr.rel (%p117) target = $region12
      $region11: #{tpu_custom_call.1} parent=5 // pred_region
        %s121 = ssub.s32 %s13, 1
        // Predicated region
        $region13: #{tpu_custom_call.1} parent=11 // pred_check
          %p122 = pneg %p60
        $region14: #{tpu_custom_call.1} parent=11 // pred_check_branch
          %124 = sbr.rel (%p122) target = $region16
        $region15: #{tpu_custom_call.1} parent=11 // pred_region
          %s126 = ssub.s32 192, 192
          %127 = vsyncadd [#allocation5], %s126
          %s128 = sshll.u32 [#allocation4], 4
          %s129 = int_to_ptr.vmem [resolvable:$true] %s128
          %134 = dma.hbm_to_vmem [thread:$0]  %s1, 192, %s129, [#allocation5], 64, 64, 4
        $region16: #{tpu_custom_call.1} parent=11 // pred_fallthru
          _
        // Predicated region
        $region17: #{tpu_custom_call.1} parent=11 // pred_check
          %p135 = pneg %p81
        $region18: #{tpu_custom_call.1} parent=11 // pred_check_branch
          %137 = sbr.rel (%p135) target = $region20
        $region19: #{tpu_custom_call.1} parent=11 // pred_region
          _
        $region20: #{tpu_custom_call.1} parent=11 // pred_fallthru
          _
      $region12: #{tpu_custom_call.1} parent=5 // pred_fallthru
        _
      %p138 = scmp.lt.s32.totalorder %s13, 2
      // Predicated region
      $region21: #{tpu_custom_call.1} parent=5 // pred_check
        %p139 = pneg %p138
      $region22: #{tpu_custom_call.1} parent=5 // pred_check_branch
        %141 = sbr.rel (%p139) target = $region24
      $region23: #{tpu_custom_call.1} parent=5 // pred_region
        // Predicated region
        $region25: #{tpu_custom_call.1} parent=23 // pred_check
          %p142 = pneg %p33
        $region26: #{tpu_custom_call.1} parent=23 // pred_check_branch
          %144 = sbr.rel (%p142) target = $region28
        $region27: #{tpu_custom_call.1} parent=23 // pred_region
          %s145 = sand.u32 %s23, 1
          %s146 = scalar_lea.sflag [#allocation3], %s145
          %s147 = sand.u32 %s23, 1
          %s148 = smul.addr %s147, 4
          %s149 = scalar_lea.vmem [#allocation2], %s148
          %s151 = ssub.s32 64, 64
          %152 = vsyncadd %s146, %s151
          %s153 = smul.addr %s13, 64
          %s154 = scalar_lea.hbm %s0, %s153
          %s156 = sshll.u32 %s149, 4
          %s157 = int_to_ptr.vmem [resolvable:$true] %s156
          %159 = dma.hbm_to_vmem [thread:$0]  %s154, 64, %s157, %s146
        $region28: #{tpu_custom_call.1} parent=23 // pred_fallthru
          _
      $region24: #{tpu_custom_call.1} parent=5 // pred_fallthru
        _
      %p160 = scmp.le.s32.totalorder 1, %s13
      %p161 = scmp.lt.s32.totalorder %s13, 3
      %p162 = pnand %p160, %p161
      %p163 = pneg %p162
      // Predicated region
      $region29: #{tpu_custom_call.1} parent=5 // pred_check
        _
      $region30: #{tpu_custom_call.1} parent=5 // pred_check_branch
        %165 = sbr.rel (%p162) target = $region32
      $region31: #{tpu_custom_call.1} parent=5 // pred_region
        %s166 = ssub.s32 %s13, 1
        %s167 = sand.u32 %s26, 1
        %s168 = scalar_lea.sflag [#allocation3], %s167
        %s169 = sand.u32 %s26, 1
        %s170 = smul.addr %s169, 4
        %s171 = scalar_lea.vmem [#allocation2], %s170
        // Predicated region
        $region33: #{tpu_custom_call.1} parent=31 // pred_check
          %p172 = pneg %p39
        $region34: #{tpu_custom_call.1} parent=31 // pred_check_branch
          %174 = sbr.rel (%p172) target = $region36
        $region35: #{tpu_custom_call.1} parent=31 // pred_region
          %175 = dma.done %s168, 64
        $region36: #{tpu_custom_call.1} parent=31 // pred_fallthru
          _
        // Predicated region
        $region37: #{tpu_custom_call.1} parent=31 // pred_check
          %p176 = pneg %p60
        $region38: #{tpu_custom_call.1} parent=31 // pred_check_branch
          %178 = sbr.rel (%p176) target = $region40
        $region39: #{tpu_custom_call.1} parent=31 // pred_region
          %179 = dma.done [#allocation5], 192
        $region40: #{tpu_custom_call.1} parent=31 // pred_fallthru
          _
        %s180 = sand.u32 %s26, 1
        %s181 = scalar_lea.sflag [#allocation3], %s180
        %s182 = sand.u32 %s26, 1
        %s183 = smul.addr %s182, 4
        %s184 = scalar_lea.vmem [#allocation2], %s183
        %p185 = pneg %p39
        %p186 = pneg %p36
        %p187 = pneg %p60
        %p188 = pneg %p57
        %p189 = pneg %p81
        %p190 = pneg %p78
        %p191 = pneg %p107
        %p192 = pneg %p104
        %p193 = scmp.lt.s32.totalorder %s18, 1
        %s194 = scalar_select %p193, %s18, 1
        %s195 = smul.addr %s194, 8
        %s196 = scalar_lea.vmem %s3, %s195
        %p197 = scmp.lt.s32.totalorder %s18, 1
        %s198 = scalar_select %p197, %s18, 1
        %s199 = smul.addr %s198, 8
        %s200 = scalar_lea.vmem %s3, %s199
        %v201 = vld [vmem:[%s171] sm:$0xf]
        %202 = vxpose.xlu0.b32.start [1/16] %v201, 128
        %203 = vxpose.xlu0.b32.cont [2/16] 0.0, 128
        %204 = vxpose.xlu0.b32.cont [3/16] 0.0, 128
        %205 = vxpose.xlu0.b32.cont [4/16] 0.0, 128
        %206 = vxpose.xlu0.b32.cont [5/16] 0.0, 128
        %207 = vxpose.xlu0.b32.cont [6/16] 0.0, 128
        %208 = vxpose.xlu0.b32.cont [7/16] 0.0, 128
        %209 = vxpose.xlu0.b32.cont [8/16] 0.0, 128
        %210 = vxpose.xlu0.b32.cont [9/16] 0.0, 128
        %211 = vxpose.xlu0.b32.cont [10/16] 0.0, 128
        %212 = vxpose.xlu0.b32.cont [11/16] 0.0, 128
        %213 = vxpose.xlu0.b32.cont [12/16] 0.0, 128
        %214 = vxpose.xlu0.b32.cont [13/16] 0.0, 128
        %215 = vxpose.xlu0.b32.cont [14/16] 0.0, 128
        %216 = vxpose.xlu0.b32.cont [15/16] 0.0, 128
        %217 = vxpose.xlu0.b32.end [16/16] 0.0, 128
        %v218 = vpop.trf.xlu0
        %v219 = vpop.trf.xlu0
        %v220 = vpop.trf.xlu0
        %v221 = vpop.trf.xlu0
        %v222 = vpop.trf.xlu0
        %v223 = vpop.trf.xlu0
        %v224 = vpop.trf.xlu0
        %v225 = vpop.trf.xlu0
        %v226 = vpop.trf.xlu0
        %v227 = vpop.trf.xlu0
        %v228 = vpop.trf.xlu0
        %v229 = vpop.trf.xlu0
        %v230 = vpop.trf.xlu0
        %v231 = vpop.trf.xlu0
        %v232 = vpop.trf.xlu0
        %v233 = vpop.trf.xlu0
        %v236 = vcombine.high %v218, %v218
        %v238 = vunpack.c.l.s4 1983009808
        %v239 = vunpack.c.0.s8 %v238
        %v240 = vlaneseq
        %v241 = vshrl.u32 %v240, 7
        %v242 = vsub.s32 %v239, %v241
        %v243 = vrot.slane %v218, %v242
        %v245 = vunpack.c.l.s4 1983009808
        %v246 = vunpack.c.0.s8 %v245
        %v247 = vlaneseq
        %v248 = vshrl.u32 %v247, 7
        %v249 = vsub.s32 %v246, %v248
        %v250 = vrot.slane %v236, %v249
        %v251 = vcombine.high %v243, %v243
        %v252 = vcombine.high %v250, %v250
        %v253 = vcombine.high %v219, %v219
        %v255 = vunpack.c.l.s4 1983009808
        %v256 = vunpack.c.0.s8 %v255
        %v257 = vlaneseq
        %v258 = vshrl.u32 %v257, 7
        %v259 = vsub.s32 %v256, %v258
        %v260 = vrot.slane %v219, %v259
        %v262 = vunpack.c.l.s4 1983009808
        %v263 = vunpack.c.0.s8 %v262
        %v264 = vlaneseq
        %v265 = vshrl.u32 %v264, 7
        %v266 = vsub.s32 %v263, %v265
        %v267 = vrot.slane %v253, %v266
        %v268 = vcombine.high %v260, %v260
        %v269 = vcombine.high %v267, %v267
        %vm278 = vcmask 25600
        %v279 = vsel %vm278, %v243, -inf
        %v280 = vrot.slane %v279, 4
        %v281 = vmax.f32 %v279, %v280
        %v282 = vrot.slane %v281, 2
        %v283 = vmax.f32 %v281, %v282
        %v284 = vrot.slane %v283, 1
        %v285 = vmax.f32 %v283, %v284
        %v286 = vsel %vm278, %v251, -inf
        %v287 = vrot.slane %v286, 4
        %v288 = vmax.f32 %v286, %v287
        %v289 = vrot.slane %v288, 2
        %v290 = vmax.f32 %v288, %v289
        %v291 = vrot.slane %v290, 1
        %v292 = vmax.f32 %v290, %v291
        %v293 = vsel %vm278, %v250, -inf
        %v294 = vrot.slane %v293, 4
        %v295 = vmax.f32 %v293, %v294
        %v296 = vrot.slane %v295, 2
        %v297 = vmax.f32 %v295, %v296
        %v298 = vrot.slane %v297, 1
        %v299 = vmax.f32 %v297, %v298
        %v300 = vsel %vm278, %v252, -inf
        %v301 = vrot.slane %v300, 4
        %v302 = vmax.f32 %v300, %v301
        %v303 = vrot.slane %v302, 2
        %v304 = vmax.f32 %v302, %v303
        %v305 = vrot.slane %v304, 1
        %v306 = vmax.f32 %v304, %v305
        %v307 = vsel %vm278, %v260, -inf
        %v308 = vrot.slane %v307, 4
        %v309 = vmax.f32 %v307, %v308
        %v310 = vrot.slane %v309, 2
        %v311 = vmax.f32 %v309, %v310
        %v312 = vrot.slane %v311, 1
        %v313 = vmax.f32 %v311, %v312
        %v314 = vsel %vm278, %v268, -inf
        %v315 = vrot.slane %v314, 4
        %v316 = vmax.f32 %v314, %v315
        %v317 = vrot.slane %v316, 2
        %v318 = vmax.f32 %v316, %v317
        %v319 = vrot.slane %v318, 1
        %v320 = vmax.f32 %v318, %v319
        %v321 = vsel %vm278, %v267, -inf
        %v322 = vrot.slane %v321, 4
        %v323 = vmax.f32 %v321, %v322
        %v324 = vrot.slane %v323, 2
        %v325 = vmax.f32 %v323, %v324
        %v326 = vrot.slane %v325, 1
        %v327 = vmax.f32 %v325, %v326
        %v328 = vsel %vm278, %v269, -inf
        %v329 = vrot.slane %v328, 4
        %v330 = vmax.f32 %v328, %v329
        %v331 = vrot.slane %v330, 2
        %v332 = vmax.f32 %v330, %v331
        %v333 = vrot.slane %v332, 1
        %v334 = vmax.f32 %v332, %v333
        %v335 = vld [vmem:[#allocation4] sm:$0xf]
        %v336 = vld [vmem:[#allocation4 + $0x4] sm:$0xf]
        %v337 = vld [vmem:[#allocation4 + $0x8] sm:$0xf]
        %vm344 = vcmask 1041409
        %v345 = vsel %vm344, %v299, %v292
        %vm346 = vcmask 1042434
        %v347 = vsel %vm346, %v306, %v345
        %vm348 = vcmask 1043459
        %v349 = vsel %vm348, %v313, %v347
        %vm350 = vcmask 1044484
        %v351 = vsel %vm350, %v320, %v349
        %vm352 = vcmask 1045509
        %v353 = vsel %vm352, %v327, %v351
        %vm354 = vcmask 31744
        %v355 = vsel %vm354, %v353, 0
        %vm357 = vcmask 1043456
        %v359 = vsel %vm357, %v336, 0
        %361 = vmatprep.subr.mxu0 0.0
        %362 = vmatpush1.msra.mxu0 %v359
        %363 = vmatprep.subr.mxu0 0.0
        %364 = vmatpush1.msra.mxu0 0.0
        %365 = vmatprep.subr.mxu0 0.0
        %366 = vmatpush1.msra.mxu0 0.0
        %367 = vmatprep.subr.mxu0 0.0
        %368 = vmatpush1.msra.mxu0 0.0
        %369 = vmatprep.subr.mxu0 0.0
        %370 = vmatpush1.msra.mxu0 0.0
        %371 = vmatprep.subr.mxu0 0.0
        %372 = vmatpush1.msra.mxu0 0.0
        %373 = vmatprep.subr.mxu0 0.0
        %374 = vmatpush1.msra.mxu0 0.0
        %375 = vmatprep.subr.mxu0 0.0
        %376 = vmatpush1.msra.mxu0 0.0
        %377 = vmatprep.subr.mxu0 0.0
        %378 = vmatpush1.msra.mxu0 0.0
        %379 = vmatprep.subr.mxu0 0.0
        %380 = vmatpush1.msra.mxu0 0.0
        %381 = vmatprep.subr.mxu0 0.0
        %382 = vmatpush1.msra.mxu0 0.0
        %383 = vmatprep.subr.mxu0 0.0
        %384 = vmatpush1.msra.mxu0 0.0
        %385 = vmatprep.subr.mxu0 0.0
        %386 = vmatpush1.msra.mxu0 0.0
        %387 = vmatprep.subr.mxu0 0.0
        %388 = vmatpush1.msra.mxu0 0.0
        %389 = vmatprep.subr.mxu0 0.0
        %390 = vmatpush1.msra.mxu0 0.0
        %391 = vmatprep.subr.mxu0 0.0
        %392 = vmatpush1.msra.mxu0 0.0
        %393 = vmatprep.subr.mxu0 0.0
        %394 = vmatpush1.msra.mxu0 0.0
        %395 = vmatprep.subr.mxu0 0.0
        %396 = vmatpush1.msra.mxu0 0.0
        %397 = vmatprep.subr.mxu0 0.0
        %398 = vmatpush1.msra.mxu0 0.0
        %399 = vmatprep.subr.mxu0 0.0
        %400 = vmatpush1.msra.mxu0 0.0
        %401 = vmatprep.subr.mxu0 0.0
        %402 = vmatpush1.msra.mxu0 0.0
        %403 = vmatprep.subr.mxu0 0.0
        %404 = vmatpush1.msra.mxu0 0.0
        %405 = vmatprep.subr.mxu0 0.0
        %406 = vmatpush1.msra.mxu0 0.0
        %407 = vmatprep.subr.mxu0 0.0
        %408 = vmatpush1.msra.mxu0 0.0
        %409 = vmatprep.subr.mxu0 0.0
        %410 = vmatpush1.msra.mxu0 0.0
        %411 = vmatprep.subr.mxu0 0.0
        %412 = vmatpush1.msra.mxu0 0.0
        %413 = vmatprep.subr.mxu0 0.0
        %414 = vmatpush1.msra.mxu0 0.0
        %415 = vmatprep.subr.mxu0 0.0
        %416 = vmatpush1.msra.mxu0 0.0
        %417 = vmatprep.subr.mxu0 0.0
        %418 = vmatpush1.msra.mxu0 0.0
        %419 = vmatprep.subr.mxu0 0.0
        %420 = vmatpush1.msra.mxu0 0.0
        %421 = vmatprep.subr.mxu0 0.0
        %422 = vmatpush1.msra.mxu0 0.0
        %423 = vmatprep.subr.mxu0 0.0
        %424 = vmatpush1.msra.mxu0 0.0
        %425 = vmatprep.mubr.f32.mxu0 0.0
        %426 = vmatmul.mubr.f32.gmra.mrb[0].mxu0 %v355
        %v427 = vpop.f32.mrb[0].mxu0
        %v428 = vadd.f32 0.0, %v427
        %v429 = vpop.f32.mrb[0].mxu0
        %430 = vdwg.mxu0
        %v432 = vsel %vm344, %v292, %v285
        %v433 = vsel %vm346, %v299, %v432
        %v434 = vsel %vm348, %v306, %v433
        %v435 = vsel %vm350, %v313, %v434
        %v436 = vsel %vm352, %v320, %v435
        %v437 = vsel %vm354, %v436, 0
        %v440 = vsel %vm357, %v335, 0
        %442 = vmatprep.subr.mxu0 0.0
        %443 = vmatpush1.msra.mxu0 %v440
        %444 = vmatprep.subr.mxu0 0.0
        %445 = vmatpush1.msra.mxu0 0.0
        %446 = vmatprep.subr.mxu0 0.0
        %447 = vmatpush1.msra.mxu0 0.0
        %448 = vmatprep.subr.mxu0 0.0
        %449 = vmatpush1.msra.mxu0 0.0
        %450 = vmatprep.subr.mxu0 0.0
        %451 = vmatpush1.msra.mxu0 0.0
        %452 = vmatprep.subr.mxu0 0.0
        %453 = vmatpush1.msra.mxu0 0.0
        %454 = vmatprep.subr.mxu0 0.0
        %455 = vmatpush1.msra.mxu0 0.0
        %456 = vmatprep.subr.mxu0 0.0
        %457 = vmatpush1.msra.mxu0 0.0
        %458 = vmatprep.subr.mxu0 0.0
        %459 = vmatpush1.msra.mxu0 0.0
        %460 = vmatprep.subr.mxu0 0.0
        %461 = vmatpush1.msra.mxu0 0.0
        %462 = vmatprep.subr.mxu0 0.0
        %463 = vmatpush1.msra.mxu0 0.0
        %464 = vmatprep.subr.mxu0 0.0
        %465 = vmatpush1.msra.mxu0 0.0
        %466 = vmatprep.subr.mxu0 0.0
        %467 = vmatpush1.msra.mxu0 0.0
        %468 = vmatprep.subr.mxu0 0.0
        %469 = vmatpush1.msra.mxu0 0.0
        %470 = vmatprep.subr.mxu0 0.0
        %471 = vmatpush1.msra.mxu0 0.0
        %472 = vmatprep.subr.mxu0 0.0
        %473 = vmatpush1.msra.mxu0 0.0
        %474 = vmatprep.subr.mxu0 0.0
        %475 = vmatpush1.msra.mxu0 0.0
        %476 = vmatprep.subr.mxu0 0.0
        %477 = vmatpush1.msra.mxu0 0.0
        %478 = vmatprep.subr.mxu0 0.0
        %479 = vmatpush1.msra.mxu0 0.0
        %480 = vmatprep.subr.mxu0 0.0
        %481 = vmatpush1.msra.mxu0 0.0
        %482 = vmatprep.subr.mxu0 0.0
        %483 = vmatpush1.msra.mxu0 0.0
        %484 = vmatprep.subr.mxu0 0.0
        %485 = vmatpush1.msra.mxu0 0.0
        %486 = vmatprep.subr.mxu0 0.0
        %487 = vmatpush1.msra.mxu0 0.0
        %488 = vmatprep.subr.mxu0 0.0
        %489 = vmatpush1.msra.mxu0 0.0
        %490 = vmatprep.subr.mxu0 0.0
        %491 = vmatpush1.msra.mxu0 0.0
        %492 = vmatprep.subr.mxu0 0.0
        %493 = vmatpush1.msra.mxu0 0.0
        %494 = vmatprep.subr.mxu0 0.0
        %495 = vmatpush1.msra.mxu0 0.0
        %496 = vmatprep.subr.mxu0 0.0
        %497 = vmatpush1.msra.mxu0 0.0
        %498 = vmatprep.subr.mxu0 0.0
        %499 = vmatpush1.msra.mxu0 0.0
        %500 = vmatprep.subr.mxu0 0.0
        %501 = vmatpush1.msra.mxu0 0.0
        %502 = vmatprep.subr.mxu0 0.0
        %503 = vmatpush1.msra.mxu0 0.0
        %504 = vmatprep.subr.mxu0 0.0
        %505 = vmatpush1.msra.mxu0 0.0
        %506 = vmatprep.mubr.f32.mxu0 0.0
        %507 = vmatmul.mubr.f32.gmra.mrb[0].mxu0 %v437
        %v508 = vpop.f32.mrb[0].mxu0
        %v509 = vadd.f32 %v428, %v508
        %v510 = vpop.f32.mrb[0].mxu0
        %511 = vdwg.mxu0
        %v513 = vsel %vm344, %v306, %v299
        %v514 = vsel %vm346, %v313, %v513
        %v515 = vsel %vm348, %v320, %v514
        %v516 = vsel %vm350, %v327, %v515
        %v517 = vsel %vm352, %v334, %v516
        %v518 = vsel %vm354, %v517, 0
        %v521 = vsel %vm357, %v337, 0
        %523 = vmatprep.subr.mxu0 0.0
        %524 = vmatpush1.msra.mxu0 %v521
        %525 = vmatprep.subr.mxu0 0.0
        %526 = vmatpush1.msra.mxu0 0.0
        %527 = vmatprep.subr.mxu0 0.0
        %528 = vmatpush1.msra.mxu0 0.0
        %529 = vmatprep.subr.mxu0 0.0
        %530 = vmatpush1.msra.mxu0 0.0
        %531 = vmatprep.subr.mxu0 0.0
        %532 = vmatpush1.msra.mxu0 0.0
        %533 = vmatprep.subr.mxu0 0.0
        %534 = vmatpush1.msra.mxu0 0.0
        %535 = vmatprep.subr.mxu0 0.0
        %536 = vmatpush1.msra.mxu0 0.0
        %537 = vmatprep.subr.mxu0 0.0
        %538 = vmatpush1.msra.mxu0 0.0
        %539 = vmatprep.subr.mxu0 0.0
        %540 = vmatpush1.msra.mxu0 0.0
        %541 = vmatprep.subr.mxu0 0.0
        %542 = vmatpush1.msra.mxu0 0.0
        %543 = vmatprep.subr.mxu0 0.0
        %544 = vmatpush1.msra.mxu0 0.0
        %545 = vmatprep.subr.mxu0 0.0
        %546 = vmatpush1.msra.mxu0 0.0
        %547 = vmatprep.subr.mxu0 0.0
        %548 = vmatpush1.msra.mxu0 0.0
        %549 = vmatprep.subr.mxu0 0.0
        %550 = vmatpush1.msra.mxu0 0.0
        %551 = vmatprep.subr.mxu0 0.0
        %552 = vmatpush1.msra.mxu0 0.0
        %553 = vmatprep.subr.mxu0 0.0
        %554 = vmatpush1.msra.mxu0 0.0
        %555 = vmatprep.subr.mxu0 0.0
        %556 = vmatpush1.msra.mxu0 0.0
        %557 = vmatprep.subr.mxu0 0.0
        %558 = vmatpush1.msra.mxu0 0.0
        %559 = vmatprep.subr.mxu0 0.0
        %560 = vmatpush1.msra.mxu0 0.0
        %561 = vmatprep.subr.mxu0 0.0
        %562 = vmatpush1.msra.mxu0 0.0
        %563 = vmatprep.subr.mxu0 0.0
        %564 = vmatpush1.msra.mxu0 0.0
        %565 = vmatprep.subr.mxu0 0.0
        %566 = vmatpush1.msra.mxu0 0.0
        %567 = vmatprep.subr.mxu0 0.0
        %568 = vmatpush1.msra.mxu0 0.0
        %569 = vmatprep.subr.mxu0 0.0
        %570 = vmatpush1.msra.mxu0 0.0
        %571 = vmatprep.subr.mxu0 0.0
        %572 = vmatpush1.msra.mxu0 0.0
        %573 = vmatprep.subr.mxu0 0.0
        %574 = vmatpush1.msra.mxu0 0.0
        %575 = vmatprep.subr.mxu0 0.0
        %576 = vmatpush1.msra.mxu0 0.0
        %577 = vmatprep.subr.mxu0 0.0
        %578 = vmatpush1.msra.mxu0 0.0
        %579 = vmatprep.subr.mxu0 0.0
        %580 = vmatpush1.msra.mxu0 0.0
        %581 = vmatprep.subr.mxu0 0.0
        %582 = vmatpush1.msra.mxu0 0.0
        %583 = vmatprep.subr.mxu0 0.0
        %584 = vmatpush1.msra.mxu0 0.0
        %585 = vmatprep.subr.mxu0 0.0
        %586 = vmatpush1.msra.mxu0 0.0
        %587 = vmatprep.mubr.f32.mxu0 0.0
        %588 = vmatmul.mubr.f32.gmra.mrb[0].mxu0 %v518
        %v589 = vpop.f32.mrb[0].mxu0
        %v590 = vadd.f32 0.0, %v589
        %v591 = vpop.f32.mrb[0].mxu0
        %592 = vdwg.mxu0
        %v593 = vadd.f32 %v509, %v590
        %v594 = vld [vmem:[%s2] sm:$0x1]
        %v596 = vlaneseq
        %v597 = vshrl.u32 %v596, 7
        %v598 = vsub.s32 0, %v597
        %v599 = vrot.slane %v594, %v598
        %v601 = vadd.f32 %v593, %v599
        %v602 = vmax.f32 %v601, 0.0
        %604 = vrot.lane.b32.xlu0 %v601, 120
        %v605 = vpop.permute.xlu0 %604
        %v607 = vadd.f32 %v602, %v605
        %608 = vxpose.xlu0.b32.start [1/16] %v607, 128
        %609 = vxpose.xlu0.b32.cont [2/16] 0.0, 128
        %610 = vxpose.xlu0.b32.cont [3/16] 0.0, 128
        %611 = vxpose.xlu0.b32.cont [4/16] 0.0, 128
        %612 = vxpose.xlu0.b32.cont [5/16] 0.0, 128
        %613 = vxpose.xlu0.b32.cont [6/16] 0.0, 128
        %614 = vxpose.xlu0.b32.cont [7/16] 0.0, 128
        %615 = vxpose.xlu0.b32.cont [8/16] 0.0, 128
        %616 = vxpose.xlu0.b32.cont [9/16] 0.0, 128
        %617 = vxpose.xlu0.b32.cont [10/16] 0.0, 128
        %618 = vxpose.xlu0.b32.cont [11/16] 0.0, 128
        %619 = vxpose.xlu0.b32.cont [12/16] 0.0, 128
        %620 = vxpose.xlu0.b32.cont [13/16] 0.0, 128
        %621 = vxpose.xlu0.b32.cont [14/16] 0.0, 128
        %622 = vxpose.xlu0.b32.cont [15/16] 0.0, 128
        %623 = vxpose.xlu0.b32.end [16/16] 0.0, 128
        %v624 = vpop.trf.xlu0
        %v625 = vpop.trf.xlu0
        %v626 = vpop.trf.xlu0
        %v627 = vpop.trf.xlu0
        %v628 = vpop.trf.xlu0
        %v629 = vpop.trf.xlu0
        %v630 = vpop.trf.xlu0
        %v631 = vpop.trf.xlu0
        %v632 = vpop.trf.xlu0
        %v633 = vpop.trf.xlu0
        %v634 = vpop.trf.xlu0
        %v635 = vpop.trf.xlu0
        %v636 = vpop.trf.xlu0
        %v637 = vpop.trf.xlu0
        %v638 = vpop.trf.xlu0
        %v639 = vpop.trf.xlu0
        %vm640 = vcmask 48128
        %641 = vst.msk [vmem:[%s200] sm:$0xff] %vm640, %v624
        %p642 = scmp.lt.s32.totalorder %s18, 1
        %s643 = scalar_select %p642, %s18, 1
        %s644 = smul.addr %s643, 8
        %s645 = scalar_lea.vmem %s3, %s644
        // Predicated region
        $region41: #{tpu_custom_call.1} parent=31 // pred_check
          %p646 = pneg %p104
        $region42: #{tpu_custom_call.1} parent=31 // pred_check_branch
          %648 = sbr.rel (%p646) target = $region44
        $region43: #{tpu_custom_call.1} parent=31 // pred_region
          _
        $region44: #{tpu_custom_call.1} parent=31 // pred_fallthru
          _
      $region32: #{tpu_custom_call.1} parent=5 // pred_fallthru
        _
      %p649 = scmp.le.s32.totalorder 2, %s13
      // Predicated region
      $region45: #{tpu_custom_call.1} parent=5 // pred_check
        %p650 = pneg %p649
      $region46: #{tpu_custom_call.1} parent=5 // pred_check_branch
        %652 = sbr.rel (%p650) target = $region48
      $region47: #{tpu_custom_call.1} parent=5 // pred_region
        %s653 = ssub.s32 %s13, 2
        // Predicated region
        $region49: #{tpu_custom_call.1} parent=47 // pred_check
          %p654 = pneg %p110
        $region50: #{tpu_custom_call.1} parent=47 // pred_check_branch
          %656 = sbr.rel (%p654) target = $region52
        $region51: #{tpu_custom_call.1} parent=47 // pred_region
          %p657 = scmp.lt.s32.totalorder %s19, 1
          %s658 = scalar_select %p657, %s19, 1
          %s659 = smul.addr %s658, 8
          %s660 = scalar_lea.vmem %s3, %s659
        $region52: #{tpu_custom_call.1} parent=47 // pred_fallthru
          _
      $region48: #{tpu_custom_call.1} parent=5 // pred_fallthru
        _
    $region6: #{tpu_custom_call.1} parent=1 // loop_footer
      %s17 = sadd.s32 1, %s13
    $region7: #{tpu_custom_call.1} parent=1 // loop_footer_branch
      %12 = sbr.rel target = $region3
    $region8: #{tpu_custom_call.1} parent=1 // loop_exit
      _
    %661 = vsyncpa [#allocation3], 1
    %s662 = scalar_lea.sflag [#allocation3], 1
    %663 = vsyncpa %s662, 1
    %664 = vsyncpa [#allocation5], 1

</llo_original>
